<compile_context>
chip_gen: v7x
topology: tpu7x:2x2x1
jax: 0.10.0
libtpu: 0.0.40
codegen_flags: <defaults>
</compile_context>

<pallas_src>
import functools
import math

import jax
import jax.numpy as jnp
import numpy as np
from jax.experimental import pallas as pl
from jax.experimental.pallas import tpu as pltpu


def _round_up(x, m):
    return ((x + m - 1) // m) * m


def clip_ratio_kernel(act_ref, mask_ref, s_ref, r_ref, out_ref,
                      m_s, l_s, m_r, l_r, sel, *, vocab_tile):
    """One (T-block, V-block) step of the prob-ratio sum.

    act_ref  : (rows, 1)  int32  action index per (step, batch) row (-1 = none)
    mask_ref : (rows, 1)  f32    1.0 for rows the torch gather touches, else 0.0
    s_ref    : (rows, vt) native scores slab
    r_ref    : (rows, vt) native ref_scores slab
    out_ref  : (1, 1)     f32    partial sum for this T-block
    m_*/l_*  : (rows, 1)  f32    online log-sum-exp accumulators
    sel      : (rows, 1)  f32    accumulated s[a] - r[a]
    """
    kv = pl.program_id(1)

    @pl.when(kv == 0)
    def _init():
        m_s[...] = jnp.full(m_s.shape, -1e30, jnp.float32)
        m_r[...] = jnp.full(m_r.shape, -1e30, jnp.float32)
        l_s[...] = jnp.zeros(l_s.shape, jnp.float32)
        l_r[...] = jnp.zeros(l_r.shape, jnp.float32)
        sel[...] = jnp.zeros(sel.shape, jnp.float32)

    a = act_ref[...]                                            # (rows, 1) int32
    col = kv * vocab_tile + jax.lax.broadcasted_iota(jnp.int32, s_ref.shape, 1)
    onehot = col == a                                           # lane-broadcast of sublane col

    def update(x_ref, m_acc, l_acc):
        xf = x_ref[...].astype(jnp.float32)                     # (rows, vt)
        bm = jnp.max(xf, axis=-1, keepdims=True)                # block max
        m_new = jnp.maximum(m_acc[...], bm)
        l_acc[...] = (l_acc[...] * jnp.exp(m_acc[...] - m_new)
                      + jnp.sum(jnp.exp(xf - m_new), axis=-1, keepdims=True))
        m_acc[...] = m_new
        # fused one-hot gather of x[a] (exact: all non-selected lanes are 0)
        return jnp.sum(jnp.where(onehot, xf, 0.0), axis=-1, keepdims=True)

    g_s = update(s_ref, m_s, l_s)
    g_r = update(r_ref, m_r, l_r)
    sel[...] = sel[...] + (g_s - g_r)

    @pl.when(kv == pl.num_programs(1) - 1)
    def _finalize():
        lse_s = m_s[...] + jnp.log(l_s[...])
        lse_r = m_r[...] + jnp.log(l_r[...])
        term = jnp.exp(sel[...] + (lse_r - lse_s)) * mask_ref[...]   # (rows, 1)
        out_ref[...] = jnp.sum(term, axis=0, keepdims=True)          # (1, 1)


def clip_objective_loss(prediction, label, scores_list, ref_scores_list, action,
                        clip_param=0.8, block_steps=None, vocab_tile=None,
                        vmem_limit_bytes=None):
    scores = jnp.stack(scores_list)           # (Ts, B, V), native dtype
    ref_scores = jnp.stack(ref_scores_list)   # (Tr, B, V)
    if not jnp.issubdtype(scores.dtype, jnp.floating):
        scores = scores.astype(jnp.float32)
    if not jnp.issubdtype(ref_scores.dtype, jnp.floating):
        ref_scores = ref_scores.astype(jnp.float32)
    Ts, B, V = scores.shape
    Tr = ref_scores.shape[0]
    T = max(Ts, Tr)                           # torch divides by the padded length
    itemsize = max(scores.dtype.itemsize, ref_scores.dtype.itemsize)

    # torch: logprobs.gather(-1, action[:, 1:B].unsqueeze(-1)) -> (A0, B-1, 1)
    action = jnp.asarray(action)
    A0 = int(min(action.shape[0], T))
    act = action[:A0, 1:B].astype(jnp.int32)
    n_valid = act.shape[1]
    # torch.gather would raise on out-of-range indices; here such rows contribute
    # sel = 0 (ratio term exp(lse_r - lse_s)) -- documented behavioural difference.
    act = jnp.where((act >= 0) & (act < V), act, -1)

    # ------------------- VMEM budget / tile selection -----------------------
    try:
        info = pltpu.get_tpu_info()
        vmem_cap = int(getattr(info, "vmem_capacity_bytes", 64 << 20))
    except Exception:                                           # interpret / CPU
        vmem_cap = 64 << 20
    if vmem_limit_bytes is None:
        if vmem_cap >= (128 << 20):
            vmem_limit = 96 << 20                               # v5e / v6e
        else:
            vmem_limit = min(32 << 20, max(vmem_cap // 2, 8 << 20))   # v7x & smaller
    else:
        vmem_limit = int(vmem_limit_bytes)
    usable = vmem_limit // 2          # headroom: pipeline overlap + compiler scratch

    def row_bytes(vt):
        return (4 * vt * itemsize     # scores + ref_scores, double-buffered
                + 4 * vt * 4          # f32 temporaries materialised in the body
                + 9 * 512)            # act/mask (2 bufs each) + 5 accumulators (lane padded)

    MIN_ROWS, MAX_ROWS = 64, 4096
    if vocab_tile is not None:
        vtu = int(vocab_tile)
        vt = V if vtu >= V else min(V, max(128, _round_up(vtu, 128)))
    else:
        vt = V
        if V > 128 and usable // row_bytes(V) < MIN_ROWS:
            for cand in (8192, 4096, 2048, 1024, 512, 256, 128):
                if cand < V and usable // row_bytes(cand) >= MIN_ROWS:
                    vt = cand
                    break
            else:
                vt = 128
    if vt >= V:
        vt, V_pad = V, V
    else:
        V_pad = _round_up(V, vt)
    num_v_blocks = max(1, V_pad // vt)

    sub_mult = 8 // math.gcd(B, 8)            # keep (tt*B) a multiple of 8
    rows_fit = max(1, min(MAX_ROWS, usable // row_bytes(vt)))
    if block_steps is None:
        tt = max(1, rows_fit // B)
    else:
        tt = max(1, int(block_steps))
    tt = min(tt, _round_up(A0, sub_mult)) if A0 > 0 else sub_mult
    tt = max(sub_mult, (tt // sub_mult) * sub_mult)
    if block_steps is None and A0 > sub_mult and -(-A0 // tt) == 1:
        # keep >=2 T-blocks so the "parallel" axis can shard across v7x's 2 cores
        tt = max(sub_mult, _round_up(-(-A0 // 2), sub_mult))
    num_t_blocks = max(1, -(-A0 // tt))
    A_pad = num_t_blocks * tt
    rows = tt * B
    R_pad = A_pad * B

    # ------------------- staging (folded, padded, native dtype) -------------
    def stage(x):
        dt = x.dtype
        if x.shape[0] == A_pad and V_pad == V:
            return x.reshape(R_pad, V)                       # free contiguous view
        fill = jnp.asarray(jnp.finfo(dt).min, dt)            # never wins the max
        n = min(x.shape[0], A_pad)
        buf = jnp.full((A_pad, B, V_pad), fill, dt)
        buf = buf.at[:, :, :V].set(jnp.zeros((), dt))        # torch's zero rows -> -log V
        buf = buf.at[:n, :, :V].set(x[:n])
        return buf.reshape(R_pad, V_pad)

    scores_flat = stage(scores)
    ref_flat = stage(ref_scores)

    act_full = jnp.full((A_pad, B), -1, jnp.int32)
    mask_full = jnp.zeros((A_pad, B), jnp.float32)
    if A0 > 0 and n_valid > 0:
        act_full = act_full.at[:A0, :n_valid].set(act)
        mask_full = mask_full.at[:A0, :n_valid].set(1.0)
    act_flat = act_full.reshape(R_pad, 1)
    mask_flat = mask_full.reshape(R_pad, 1)

    # ------------------- pallas_call ----------------------------------------
    kernel = functools.partial(clip_ratio_kernel, vocab_tile=vt)

    partials = pl.pallas_call(
        kernel,
        out_shape=jax.ShapeDtypeStruct((num_t_blocks, 1, 1), jnp.float32),
        grid_spec=pltpu.PrefetchScalarGridSpec(
            num_scalar_prefetch=0,
            grid=(num_t_blocks, num_v_blocks),
            in_specs=[
                pl.BlockSpec((rows, 1), lambda t, v: (t, 0)),    # action ids (sublanes)
                pl.BlockSpec((rows, 1), lambda t, v: (t, 0)),    # validity mask
                pl.BlockSpec((rows, vt), lambda t, v: (t, v)),   # scores slab
                pl.BlockSpec((rows, vt), lambda t, v: (t, v)),   # ref_scores slab
            ],
            out_specs=pl.BlockSpec((None, 1, 1), lambda t, v: (t, 0, 0)),
            scratch_shapes=[pltpu.VMEM((rows, 1), jnp.float32) for _ in range(5)],
        ),
        compiler_params=pltpu.CompilerParams(
            dimension_semantics=("parallel", "arbitrary"),
            vmem_limit_bytes=int(vmem_limit),
        ),
    )(act_flat, mask_flat, scores_flat, ref_flat)

    # ratio = sum exp(log p(a) - log p_ref(a)) / T   (T = padded length, as in torch)
    ratio = jnp.sum(partials) / T

    # TODO(synk): reward.base_reward is external/undefined in the source module;
    # use the deterministic stand-in reward(l, p) = -(p - l) ** 2 for the advantage.
    pred = jnp.asarray(prediction, jnp.float32)
    lab = jnp.asarray(label, jnp.float32)
    advantage = jnp.mean(-(pred - lab) ** 2)

    clipped = jnp.clip(ratio, 1.0 - clip_param, 1.0 + clip_param)
    return -jnp.minimum(ratio * advantage, clipped * advantage)


def reference_loss(prediction, label, scores_list, ref_scores_list, action,
                   clip_param=0.8):
    """Pure-JAX reference reproducing the PyTorch module's semantics."""
    scores = jnp.stack(scores_list).astype(jnp.float32)
    ref_scores = jnp.stack(ref_scores_list).astype(jnp.float32)
    Ts, B, V = scores.shape
    Tr = ref_scores.shape[0]
    T = max(Ts, Tr)
    if Ts < T:
        scores = jnp.concatenate([scores, jnp.zeros((T - Ts, B, V), jnp.float32)], 0)
    if Tr < T:
        ref_scores = jnp.concatenate([ref_scores, jnp.zeros((T - Tr, B, V), jnp.float32)], 0)
    logp = jax.nn.log_softmax(scores, axis=-1)
    rlogp = jax.nn.log_softmax(ref_scores, axis=-1)
    action = jnp.asarray(action)
    idx = action[:min(action.shape[0], T), 1:B][..., None]       # (A0, B-1, 1)
    A0, nv = idx.shape[0], idx.shape[1]
    la = jnp.take_along_axis(logp[:A0, :nv], idx, axis=-1)
    rla = jnp.take_along_axis(rlogp[:A0, :nv], idx, axis=-1)
    ratio = jnp.exp(la - rla).sum() / T
    adv = jnp.mean(-(jnp.asarray(prediction, jnp.float32)
                     - jnp.asarray(label, jnp.float32)) ** 2)
    clipped = jnp.clip(ratio, 1.0 - clip_param, 1.0 + clip_param)
    return -jnp.minimum(ratio * adv, clipped * adv)


if __name__ == "__main__":
    def make_case(key, B, V, T_scores, T_ref, N, dtype=jnp.float32):
        ks, kr, ka, kp, kl = jax.random.split(key, 5)
        scores_list = [jax.random.normal(jax.random.fold_in(ks, i), (B, V)).astype(dtype)
                       for i in range(T_scores)]
        ref_scores_list = [jax.random.normal(jax.random.fold_in(kr, i), (B, V)).astype(dtype)
                           for i in range(T_ref)]
        T = max(T_scores, T_ref)
        action = jax.random.randint(ka, (T, B), 0, V, dtype=jnp.int32)
        prediction = jax.random.normal(kp, (N,), jnp.float32)
        label = jax.random.normal(kl, (N,), jnp.float32)
        return prediction, label, scores_list, ref_scores_list, action

    key = jax.random.PRNGKey(0)
    k1, k2, k3, k4 = jax.random.split(key, 4)

    # 1) unequal lengths (zero-pad -> -log V path), auto tiling, single vocab block
    args1 = make_case(k1, B=8, V=128, T_scores=4, T_ref=3, N=8)
    out1 = clip_objective_loss(*args1, clip_param=0.8)
    jax.block_until_ready(out1)
    np.testing.assert_allclose(np.asarray(out1),
                               np.asarray(reference_loss(*args1, clip_param=0.8)),
                               rtol=2e-3, atol=2e-3)

    # 2) multi T-block grid + vocab-axis grid with online log-sum-exp
    args2 = make_case(k2, B=8, V=384, T_scores=20, T_ref=17, N=8)
    out2 = clip_objective_loss(*args2, clip_param=0.8, block_steps=8, vocab_tile=128)
    jax.block_until_ready(out2)
    np.testing.assert_allclose(np.asarray(out2),
                               np.asarray(reference_loss(*args2, clip_param=0.8)),
                               rtol=2e-3, atol=2e-3)

    # 3) non-multiple-of-128 vocab (padded lanes) + batch needing sublane alignment
    args3 = make_case(k3, B=5, V=200, T_scores=6, T_ref=9, N=6)
    out3 = clip_objective_loss(*args3, clip_param=0.8, vocab_tile=128)
    jax.block_until_ready(out3)
    np.testing.assert_allclose(np.asarray(out3),
                               np.asarray(reference_loss(*args3, clip_param=0.8)),
                               rtol=2e-3, atol=2e-3)

    # 4) bf16 logits stay bf16 in HBM; log-sum-exp accumulation stays in f32
    args4 = make_case(k4, B=8, V=256, T_scores=5, T_ref=5, N=8, dtype=jnp.bfloat16)
    out4 = clip_objective_loss(*args4, clip_param=0.8)
    jax.block_until_ready(out4)
    np.testing.assert_allclose(np.asarray(out4),
                               np.asarray(reference_loss(*args4, clip_param=0.8)),
                               rtol=2e-3, atol=2e-3)

    print("KERNEL_OK")
</pallas_src>

<mosaic_0001>
module attributes {stable_mosaic.version = 11 : i64} {
  func.func @clip_ratio_kernel(%arg0: i32, %arg1: i32, %arg2: memref<16x1xi32, #tpu.memory_space<vmem>>, %arg3: memref<16x1xf32, #tpu.memory_space<vmem>>, %arg4: memref<16x128xf32, #tpu.memory_space<vmem>>, %arg5: memref<16x128xf32, #tpu.memory_space<vmem>>, %arg6: memref<1x1x1xf32, #tpu.memory_space<vmem>>, %arg7: memref<16x1xf32, #tpu.memory_space<vmem>>, %arg8: memref<16x1xf32, #tpu.memory_space<vmem>>, %arg9: memref<16x1xf32, #tpu.memory_space<vmem>>, %arg10: memref<16x1xf32, #tpu.memory_space<vmem>>, %arg11: memref<16x1xf32, #tpu.memory_space<vmem>>) attributes {dimension_semantics = [#tpu.dimension_semantics<parallel>, #tpu.dimension_semantics<arbitrary>], iteration_bounds = array<i64: 2, 1>, scalar_prefetch = 0 : i64, scratch_operands = 5 : i64, tpu.core_type = #tpu.core_type<tc>, window_params = [{transform_indices = @transform_0, window_bounds = array<i64: 16, 1>}, {transform_indices = @transform_1, window_bounds = array<i64: 16, 1>}, {transform_indices = @transform_2, window_bounds = array<i64: 16, 128>}, {transform_indices = @transform_3, window_bounds = array<i64: 16, 128>}, {transform_indices = @transform_4, window_bounds = array<i64: 1, 1, 1>}]} {
    %c0_i32 = arith.constant 0 : i32
    %0 = arith.cmpi eq, %arg1, %c0_i32 : i32
    %1 = arith.extui %0 : i1 to i32
    %c0_i32_0 = arith.constant 0 : i32
    %2 = arith.cmpi ne, %1, %c0_i32_0 : i32
    scf.if %2 {
      %cst_39 = arith.constant -1.000000e+30 : f32
      %61 = vector.broadcast %cst_39 : f32 to vector<16x1xf32>
      %c0_40 = arith.constant 0 : index
      %c0_41 = arith.constant 0 : index
      %62 = vector.load %arg7[%c0_40, %c0_41] : memref<16x1xf32, #tpu.memory_space<vmem>>, vector<16x1xf32>
      tpu.vector_store %arg7[%c0_40, %c0_41], %61 {strides = array<i32>} : memref<16x1xf32, #tpu.memory_space<vmem>>, vector<16x1xf32>,
      %cst_42 = arith.constant -1.000000e+30 : f32
      %63 = vector.broadcast %cst_42 : f32 to vector<16x1xf32>
      %c0_43 = arith.constant 0 : index
      %c0_44 = arith.constant 0 : index
      %64 = vector.load %arg9[%c0_43, %c0_44] : memref<16x1xf32, #tpu.memory_space<vmem>>, vector<16x1xf32>
      tpu.vector_store %arg9[%c0_43, %c0_44], %63 {strides = array<i32>} : memref<16x1xf32, #tpu.memory_space<vmem>>, vector<16x1xf32>,
      %cst_45 = arith.constant 0.000000e+00 : f32
      %65 = vector.broadcast %cst_45 : f32 to vector<16x1xf32>
      %c0_46 = arith.constant 0 : index
      %c0_47 = arith.constant 0 : index
      %66 = vector.load %arg8[%c0_46, %c0_47] : memref<16x1xf32, #tpu.memory_space<vmem>>, vector<16x1xf32>
      tpu.vector_store %arg8[%c0_46, %c0_47], %65 {strides = array<i32>} : memref<16x1xf32, #tpu.memory_space<vmem>>, vector<16x1xf32>,
      %cst_48 = arith.constant 0.000000e+00 : f32
      %67 = vector.broadcast %cst_48 : f32 to vector<16x1xf32>
      %c0_49 = arith.constant 0 : index
      %c0_50 = arith.constant 0 : index
      %68 = vector.load %arg10[%c0_49, %c0_50] : memref<16x1xf32, #tpu.memory_space<vmem>>, vector<16x1xf32>
      tpu.vector_store %arg10[%c0_49, %c0_50], %67 {strides = array<i32>} : memref<16x1xf32, #tpu.memory_space<vmem>>, vector<16x1xf32>,
      %cst_51 = arith.constant 0.000000e+00 : f32
      %69 = vector.broadcast %cst_51 : f32 to vector<16x1xf32>
      %c0_52 = arith.constant 0 : index
      %c0_53 = arith.constant 0 : index
      %70 = vector.load %arg11[%c0_52, %c0_53] : memref<16x1xf32, #tpu.memory_space<vmem>>, vector<16x1xf32>
      tpu.vector_store %arg11[%c0_52, %c0_53], %69 {strides = array<i32>} : memref<16x1xf32, #tpu.memory_space<vmem>>, vector<16x1xf32>,
    } else {
    }
    %c0 = arith.constant 0 : index
    %c0_1 = arith.constant 0 : index
    %3 = vector.load %arg2[%c0, %c0_1] : memref<16x1xi32, #tpu.memory_space<vmem>>, vector<16x1xi32>
    %c128_i32 = arith.constant 128 : i32
    %4 = arith.muli %arg1, %c128_i32 : i32
    %5 = tpu.iota {dimensions = array<i32: 1>} : vector<16x128xi32>
    %6 = vector.broadcast %4 : i32 to vector<16x128xi32>
    %7 = arith.addi %6, %5 : vector<16x128xi32>
    %8 = vector.broadcast %3 : vector<16x1xi32> to vector<16x128xi32>
    %9 = arith.cmpi eq, %7, %8 : vector<16x128xi32>
    %c0_2 = arith.constant 0 : index
    %c0_3 = arith.constant 0 : index
    %10 = vector.load %arg4[%c0_2, %c0_3] : memref<16x128xf32, #tpu.memory_space<vmem>>, vector<16x128xf32>
    %cst = arith.constant dense<0xFF800000> : vector<16xf32>
    %11 = vector.multi_reduction <maximumf>, %10, %cst [1] : vector<16x128xf32> to vector<16xf32>
    %12 = vector.shape_cast %11 : vector<16xf32> to vector<16x1xf32>
    %c0_4 = arith.constant 0 : index
    %c0_5 = arith.constant 0 : index
    %13 = vector.load %arg7[%c0_4, %c0_5] : memref<16x1xf32, #tpu.memory_space<vmem>>, vector<16x1xf32>
    %14 = arith.maximumf %13, %12 : vector<16x1xf32>
    %c0_6 = arith.constant 0 : index
    %c0_7 = arith.constant 0 : index
    %15 = vector.load %arg8[%c0_6, %c0_7] : memref<16x1xf32, #tpu.memory_space<vmem>>, vector<16x1xf32>
    %c0_8 = arith.constant 0 : index
    %c0_9 = arith.constant 0 : index
    %16 = vector.load %arg7[%c0_8, %c0_9] : memref<16x1xf32, #tpu.memory_space<vmem>>, vector<16x1xf32>
    %17 = arith.subf %16, %14 : vector<16x1xf32>
    %18 = math.exp %17 : vector<16x1xf32>
    %19 = arith.mulf %15, %18 : vector<16x1xf32>
    %20 = vector.broadcast %14 : vector<16x1xf32> to vector<16x128xf32>
    %21 = arith.subf %10, %20 : vector<16x128xf32>
    %22 = math.exp %21 : vector<16x128xf32>
    %cst_10 = arith.constant dense<0.000000e+00> : vector<16xf32>
    %23 = vector.multi_reduction <add>, %22, %cst_10 [1] : vector<16x128xf32> to vector<16xf32>
    %24 = vector.shape_cast %23 : vector<16xf32> to vector<16x1xf32>
    %25 = arith.addf %19, %24 : vector<16x1xf32>
    %c0_11 = arith.constant 0 : index
    %c0_12 = arith.constant 0 : index
    %26 = vector.load %arg8[%c0_11, %c0_12] : memref<16x1xf32, #tpu.memory_space<vmem>>, vector<16x1xf32>
    tpu.vector_store %arg8[%c0_11, %c0_12], %25 {strides = array<i32>} : memref<16x1xf32, #tpu.memory_space<vmem>>, vector<16x1xf32>,
    %c0_13 = arith.constant 0 : index
    %c0_14 = arith.constant 0 : index
    %27 = vector.load %arg7[%c0_13, %c0_14] : memref<16x1xf32, #tpu.memory_space<vmem>>, vector<16x1xf32>
    tpu.vector_store %arg7[%c0_13, %c0_14], %14 {strides = array<i32>} : memref<16x1xf32, #tpu.memory_space<vmem>>, vector<16x1xf32>,
    %cst_15 = arith.constant 0.000000e+00 : f32
    %28 = vector.broadcast %cst_15 : f32 to vector<16x128xf32>
    %29 = arith.select %9, %10, %28 : vector<16x128xi1>, vector<16x128xf32>
    %cst_16 = arith.constant dense<0.000000e+00> : vector<16xf32>
    %30 = vector.multi_reduction <add>, %29, %cst_16 [1] : vector<16x128xf32> to vector<16xf32>
    %31 = vector.shape_cast %30 : vector<16xf32> to vector<16x1xf32>
    %c0_17 = arith.constant 0 : index
    %c0_18 = arith.constant 0 : index
    %32 = vector.load %arg5[%c0_17, %c0_18] : memref<16x128xf32, #tpu.memory_space<vmem>>, vector<16x128xf32>
    %cst_19 = arith.constant dense<0xFF800000> : vector<16xf32>
    %33 = vector.multi_reduction <maximumf>, %32, %cst_19 [1] : vector<16x128xf32> to vector<16xf32>
    %34 = vector.shape_cast %33 : vector<16xf32> to vector<16x1xf32>
    %c0_20 = arith.constant 0 : index
    %c0_21 = arith.constant 0 : index
    %35 = vector.load %arg9[%c0_20, %c0_21] : memref<16x1xf32, #tpu.memory_space<vmem>>, vector<16x1xf32>
    %36 = arith.maximumf %35, %34 : vector<16x1xf32>
    %c0_22 = arith.constant 0 : index
    %c0_23 = arith.constant 0 : index
    %37 = vector.load %arg10[%c0_22, %c0_23] : memref<16x1xf32, #tpu.memory_space<vmem>>, vector<16x1xf32>
    %c0_24 = arith.constant 0 : index
    %c0_25 = arith.constant 0 : index
    %38 = vector.load %arg9[%c0_24, %c0_25] : memref<16x1xf32, #tpu.memory_space<vmem>>, vector<16x1xf32>
    %39 = arith.subf %38, %36 : vector<16x1xf32>
    %40 = math.exp %39 : vector<16x1xf32>
    %41 = arith.mulf %37, %40 : vector<16x1xf32>
    %42 = vector.broadcast %36 : vector<16x1xf32> to vector<16x128xf32>
    %43 = arith.subf %32, %42 : vector<16x128xf32>
    %44 = math.exp %43 : vector<16x128xf32>
    %cst_26 = arith.constant dense<0.000000e+00> : vector<16xf32>
    %45 = vector.multi_reduction <add>, %44, %cst_26 [1] : vector<16x128xf32> to vector<16xf32>
    %46 = vector.shape_cast %45 : vector<16xf32> to vector<16x1xf32>
    %47 = arith.addf %41, %46 : vector<16x1xf32>
    %c0_27 = arith.constant 0 : index
    %c0_28 = arith.constant 0 : index
    %48 = vector.load %arg10[%c0_27, %c0_28] : memref<16x1xf32, #tpu.memory_space<vmem>>, vector<16x1xf32>
    tpu.vector_store %arg10[%c0_27, %c0_28], %47 {strides = array<i32>} : memref<16x1xf32, #tpu.memory_space<vmem>>, vector<16x1xf32>,
    %c0_29 = arith.constant 0 : index
    %c0_30 = arith.constant 0 : index
    %49 = vector.load %arg9[%c0_29, %c0_30] : memref<16x1xf32, #tpu.memory_space<vmem>>, vector<16x1xf32>
    tpu.vector_store %arg9[%c0_29, %c0_30], %36 {strides = array<i32>} : memref<16x1xf32, #tpu.memory_space<vmem>>, vector<16x1xf32>,
    %cst_31 = arith.constant 0.000000e+00 : f32
    %50 = vector.broadcast %cst_31 : f32 to vector<16x128xf32>
    %51 = arith.select %9, %32, %50 : vector<16x128xi1>, vector<16x128xf32>
    %cst_32 = arith.constant dense<0.000000e+00> : vector<16xf32>
    %52 = vector.multi_reduction <add>, %51, %cst_32 [1] : vector<16x128xf32> to vector<16xf32>
    %53 = vector.shape_cast %52 : vector<16xf32> to vector<16x1xf32>
    %c0_33 = arith.constant 0 : index
    %c0_34 = arith.constant 0 : index
    %54 = vector.load %arg11[%c0_33, %c0_34] : memref<16x1xf32, #tpu.memory_space<vmem>>, vector<16x1xf32>
    %55 = arith.subf %31, %53 : vector<16x1xf32>
    %56 = arith.addf %54, %55 : vector<16x1xf32>
    %c0_35 = arith.constant 0 : index
    %c0_36 = arith.constant 0 : index
    %57 = vector.load %arg11[%c0_35, %c0_36] : memref<16x1xf32, #tpu.memory_space<vmem>>, vector<16x1xf32>
    tpu.vector_store %arg11[%c0_35, %c0_36], %56 {strides = array<i32>} : memref<16x1xf32, #tpu.memory_space<vmem>>, vector<16x1xf32>,
    %c0_i32_37 = arith.constant 0 : i32
    %58 = arith.cmpi eq, %arg1, %c0_i32_37 : i32
    %59 = arith.extui %58 : i1 to i32
    %c0_i32_38 = arith.constant 0 : i32
    %60 = arith.cmpi ne, %59, %c0_i32_38 : i32
    scf.if %60 {
      %c0_39 = arith.constant 0 : index
      %c0_40 = arith.constant 0 : index
      %61 = vector.load %arg7[%c0_39, %c0_40] : memref<16x1xf32, #tpu.memory_space<vmem>>, vector<16x1xf32>
      %c0_41 = arith.constant 0 : index
      %c0_42 = arith.constant 0 : index
      %62 = vector.load %arg8[%c0_41, %c0_42] : memref<16x1xf32, #tpu.memory_space<vmem>>, vector<16x1xf32>
      %63 = math.log %62 : vector<16x1xf32>
      %64 = arith.addf %61, %63 : vector<16x1xf32>
      %c0_43 = arith.constant 0 : index
      %c0_44 = arith.constant 0 : index
      %65 = vector.load %arg9[%c0_43, %c0_44] : memref<16x1xf32, #tpu.memory_space<vmem>>, vector<16x1xf32>
      %c0_45 = arith.constant 0 : index
      %c0_46 = arith.constant 0 : index
      %66 = vector.load %arg10[%c0_45, %c0_46] : memref<16x1xf32, #tpu.memory_space<vmem>>, vector<16x1xf32>
      %67 = math.log %66 : vector<16x1xf32>
      %68 = arith.addf %65, %67 : vector<16x1xf32>
      %c0_47 = arith.constant 0 : index
      %c0_48 = arith.constant 0 : index
      %69 = vector.load %arg11[%c0_47, %c0_48] : memref<16x1xf32, #tpu.memory_space<vmem>>, vector<16x1xf32>
      %70 = arith.subf %68, %64 : vector<16x1xf32>
      %71 = arith.addf %69, %70 : vector<16x1xf32>
      %72 = math.exp %71 : vector<16x1xf32>
      %c0_49 = arith.constant 0 : index
      %c0_50 = arith.constant 0 : index
      %73 = vector.load %arg3[%c0_49, %c0_50] : memref<16x1xf32, #tpu.memory_space<vmem>>, vector<16x1xf32>
      %74 = arith.mulf %72, %73 : vector<16x1xf32>
      %cst_51 = arith.constant dense<0.000000e+00> : vector<1xf32>
      %75 = vector.multi_reduction <add>, %74, %cst_51 [0] : vector<16x1xf32> to vector<1xf32>
      %76 = vector.shape_cast %75 : vector<1xf32> to vector<1x1xf32>
      %c0_52 = arith.constant 0 : index
      %c0_53 = arith.constant 0 : index
      %c0_54 = arith.constant 0 : index
      %77 = vector.load %arg6[%c0_52, %c0_53, %c0_54] : memref<1x1x1xf32, #tpu.memory_space<vmem>>, vector<1x1x1xf32>
      %78 = vector.shape_cast %77 : vector<1x1x1xf32> to vector<1x1xf32>
      %79 = vector.shape_cast %76 : vector<1x1xf32> to vector<1x1x1xf32>
      tpu.vector_store %arg6[%c0_52, %c0_53, %c0_54], %79 {strides = array<i32>} : memref<1x1x1xf32, #tpu.memory_space<vmem>>, vector<1x1x1xf32>,
    } else {
    }
    return
  }
  func.func @transform_0(%arg0: i32, %arg1: i32) -> (i32, i32) {
    %c0_i32 = arith.constant 0 : i32
    %c0_i32_0 = arith.constant 0 : i32
    return %arg0, %c0_i32 : i32, i32
  }
  func.func @transform_1(%arg0: i32, %arg1: i32) -> (i32, i32) {
    %c0_i32 = arith.constant 0 : i32
    %c0_i32_0 = arith.constant 0 : i32
    return %arg0, %c0_i32 : i32, i32
  }
  func.func @transform_2(%arg0: i32, %arg1: i32) -> (i32, i32) {
    %c0_i32 = arith.constant 0 : i32
    return %arg0, %arg1 : i32, i32
  }
  func.func @transform_3(%arg0: i32, %arg1: i32) -> (i32, i32) {
    %c0_i32 = arith.constant 0 : i32
    return %arg0, %arg1 : i32, i32
  }
  func.func @transform_4(%arg0: i32, %arg1: i32) -> (i32, i32, i32) {
    %c0_i32 = arith.constant 0 : i32
    %c0_i32_0 = arith.constant 0 : i32
    %c0_i32_1 = arith.constant 0 : i32
    return %arg0, %c0_i32, %c0_i32_0 : i32, i32, i32
  }
}

</mosaic_0001>

<llo_original>
// kernel: tpu_custom_call.1
$region0: #{tpu_custom_call.1}
  #allocation0 [shape = 'u32[]', space=smem, size = 0x4, offset = 0x4, fixed_abs, tag = 'smem constant byte address 0x4 - core index']
  #allocation1 [shape = 'u32[144,128]{1,0:T(1,128)}', space=vmem, size = 0x12000, scoped, tag = 'internal scratch']
  #allocation2 [shape = 'f32[16,1]{1,0:T(8,128)}', space=vmem, size = 0x2000, scoped, tag = 'scratch operand']
  #allocation3 [shape = 'f32[16,1]{1,0:T(8,128)}', space=vmem, size = 0x2000, scoped, tag = 'scratch operand']
  #allocation4 [shape = 'f32[16,1]{1,0:T(8,128)}', space=vmem, size = 0x2000, scoped, tag = 'scratch operand']
  #allocation5 [shape = 'f32[16,1]{1,0:T(8,128)}', space=vmem, size = 0x2000, scoped, tag = 'scratch operand']
  #allocation6 [shape = 'f32[16,1]{1,0:T(8,128)}', space=vmem, size = 0x2000, scoped, tag = 'scratch operand']
  %s0 = inlined_call_operand.vmem [shape: s32[32,1], index: 0, kind: input, shape index: {}]
  %s1 = inlined_call_operand.vmem [shape: f32[32,1], index: 1, kind: input, shape index: {}]
  %s2 = inlined_call_operand.vmem [shape: f32[32,128], index: 2, kind: input, shape index: {}]
  %s3 = inlined_call_operand.vmem [shape: f32[32,128], index: 3, kind: input, shape index: {}]
  %s4 = inlined_call_operand.vmem [shape: f32[2,1,1], index: 4, kind: output, shape index: {}]
  %s5 = sld [smem:[#allocation0]]
  $region57: #{tpu_custom_call.1} parent=0
    _
  %s7 = ssub.s32 1, %s5
  %s8 = scalar_select 0, %s7, %s5
  loop: start=0, step=1, limit=4
  $region2: #{tpu_custom_call.1} parent=0 // loop_pre_header
    _
  $region3: #{tpu_custom_call.1} parent=0 // loop_header
    %s10 = sphi 0, %s14
    %p11 = scmp.ge.s32.totalorder %s10, 4
    %s17 = sphi 0, %s29
    %s18 = sphi 0, %s25
    %s19 = sphi 0, %s17
    %s20 = sphi 0, %s18
    %s21 = sphi 0, %s19
    %s22 = sphi 0, %s20
    %s32 = sphi 0, %s34
    %s35 = sphi 0, %s32
    %s36 = sphi 0, %s35
    %s52 = sphi 0, %s36
    %s58 = sphi 0, %s60
    %s61 = sphi 0, %s58
    %s62 = sphi 0, %s61
    %s78 = sphi 0, %s62
    %s86 = sphi 0, %s88
    %s89 = sphi 0, %s86
    %s90 = sphi 0, %s89
    %s106 = sphi 0, %s90
    %s114 = sphi 0, %s116
    %s117 = sphi 0, %s114
    %s118 = sphi 0, %s117
    %s134 = sphi 0, %s118
    %s140 = sphi 0, %s142
    %s143 = sphi 0, %s140
    %s144 = sphi 0, %s143
    %s160 = sphi 0, %s144
  $region4: #{tpu_custom_call.1} parent=0 // loop_header_branch
    %13 = sbr.rel (%p11) target = $region8
  $region5: #{tpu_custom_call.1} parent=0 // loop_body
    %s15 = ssub.s32 %s10, 1
    %s16 = ssub.s32 %s10, 2
    %s23 = sadd.s32 1, %s18
    %p24 = scmp.ge.s32.totalorder %s23, 1
    %s25 = scalar_select %p24, 0, %s23
    %s26 = sadd.s32 1, %s17
    %s27 = scalar_select %p24, %s26, %s17
    %p28 = scmp.ge.s32.totalorder %s27, 2
    %s29 = scalar_select %p28, 0, %s27
    %s30 = ssub.s32 %s17, %s29
    %p31 = scmp.eq.s32.totalorder %s30, 0
    %s33 = sadd.s32 %s32, 1
    %s34 = scalar_select %p31, %s32, %s33
    %p37 = pneg %p31
    %p38 = scmp.eq.s32.totalorder %s10, 1
    %p39 = por %p37, %p38
    %p40 = scmp.ne.s32.totalorder %s32, %s35
    %p41 = scmp.eq.s32.totalorder %s10, 0
    %p42 = por %p40, %p41
    %p43 = scmp.ne.s32.totalorder %s32, %s35
    %p44 = scmp.eq.s32.totalorder %s15, 1
    %p45 = por %p43, %p44
    %p46 = scmp.ne.s32.totalorder %s35, %s36
    %p47 = scmp.eq.s32.totalorder %s15, 0
    %p48 = por %p46, %p47
    %p49 = scmp.ne.s32.totalorder %s35, %s36
    %p50 = scmp.eq.s32.totalorder %s16, 1
    %p51 = por %p49, %p50
    %p53 = scmp.ne.s32.totalorder %s36, %s52
    %p54 = scmp.eq.s32.totalorder %s16, 0
    %p55 = por %p53, %p54
    %s56 = ssub.s32 %s17, %s29
    %p57 = scmp.eq.s32.totalorder %s56, 0
    %s59 = sadd.s32 %s58, 1
    %s60 = scalar_select %p57, %s58, %s59
    %p63 = pneg %p57
    %p64 = scmp.eq.s32.totalorder %s10, 1
    %p65 = por %p63, %p64
    %p66 = scmp.ne.s32.totalorder %s58, %s61
    %p67 = scmp.eq.s32.totalorder %s10, 0
    %p68 = por %p66, %p67
    %p69 = scmp.ne.s32.totalorder %s58, %s61
    %p70 = scmp.eq.s32.totalorder %s15, 1
    %p71 = por %p69, %p70
    %p72 = scmp.ne.s32.totalorder %s61, %s62
    %p73 = scmp.eq.s32.totalorder %s15, 0
    %p74 = por %p72, %p73
    %p75 = scmp.ne.s32.totalorder %s61, %s62
    %p76 = scmp.eq.s32.totalorder %s16, 1
    %p77 = por %p75, %p76
    %p79 = scmp.ne.s32.totalorder %s62, %s78
    %p80 = scmp.eq.s32.totalorder %s16, 0
    %p81 = por %p79, %p80
    %s82 = ssub.s32 %s17, %s29
    %s83 = ssub.s32 %s18, %s25
    %s84 = sor.u32 %s82, %s83
    %p85 = scmp.eq.s32.totalorder %s84, 0
    %s87 = sadd.s32 %s86, 1
    %s88 = scalar_select %p85, %s86, %s87
    %p91 = pneg %p85
    %p92 = scmp.eq.s32.totalorder %s10, 1
    %p93 = por %p91, %p92
    %p94 = scmp.ne.s32.totalorder %s86, %s89
    %p95 = scmp.eq.s32.totalorder %s10, 0
    %p96 = por %p94, %p95
    %p97 = scmp.ne.s32.totalorder %s86, %s89
    %p98 = scmp.eq.s32.totalorder %s15, 1
    %p99 = por %p97, %p98
    %p100 = scmp.ne.s32.totalorder %s89, %s90
    %p101 = scmp.eq.s32.totalorder %s15, 0
    %p102 = por %p100, %p101
    %p103 = scmp.ne.s32.totalorder %s89, %s90
    %p104 = scmp.eq.s32.totalorder %s16, 1
    %p105 = por %p103, %p104
    %p107 = scmp.ne.s32.totalorder %s90, %s106
    %p108 = scmp.eq.s32.totalorder %s16, 0
    %p109 = por %p107, %p108
    %s110 = ssub.s32 %s17, %s29
    %s111 = ssub.s32 %s18, %s25
    %s112 = sor.u32 %s110, %s111
    %p113 = scmp.eq.s32.totalorder %s112, 0
    %s115 = sadd.s32 %s114, 1
    %s116 = scalar_select %p113, %s114, %s115
    %p119 = pneg %p113
    %p120 = scmp.eq.s32.totalorder %s10, 1
    %p121 = por %p119, %p120
    %p122 = scmp.ne.s32.totalorder %s114, %s117
    %p123 = scmp.eq.s32.totalorder %s10, 0
    %p124 = por %p122, %p123
    %p125 = scmp.ne.s32.totalorder %s114, %s117
    %p126 = scmp.eq.s32.totalorder %s15, 1
    %p127 = por %p125, %p126
    %p128 = scmp.ne.s32.totalorder %s117, %s118
    %p129 = scmp.eq.s32.totalorder %s15, 0
    %p130 = por %p128, %p129
    %p131 = scmp.ne.s32.totalorder %s117, %s118
    %p132 = scmp.eq.s32.totalorder %s16, 1
    %p133 = por %p131, %p132
    %p135 = scmp.ne.s32.totalorder %s118, %s134
    %p136 = scmp.eq.s32.totalorder %s16, 0
    %p137 = por %p135, %p136
    %s138 = ssub.s32 %s17, %s29
    %p139 = scmp.eq.s32.totalorder %s138, 0
    %s141 = sadd.s32 %s140, 1
    %s142 = scalar_select %p139, %s140, %s141
    %p145 = pneg %p139
    %p146 = scmp.eq.s32.totalorder %s10, 1
    %p147 = por %p145, %p146
    %p148 = scmp.ne.s32.totalorder %s140, %s143
    %p149 = scmp.eq.s32.totalorder %s10, 0
    %p150 = por %p148, %p149
    %p151 = scmp.ne.s32.totalorder %s140, %s143
    %p152 = scmp.eq.s32.totalorder %s15, 1
    %p153 = por %p151, %p152
    %p154 = scmp.ne.s32.totalorder %s143, %s144
    %p155 = scmp.eq.s32.totalorder %s15, 0
    %p156 = por %p154, %p155
    %p157 = scmp.ne.s32.totalorder %s143, %s144
    %p158 = scmp.eq.s32.totalorder %s16, 1
    %p159 = por %p157, %p158
    %p161 = scmp.ne.s32.totalorder %s144, %s160
    %p162 = scmp.eq.s32.totalorder %s16, 0
    %p163 = por %p161, %p162
    %p164 = scmp.le.s32.totalorder 1, %s10
    %p165 = scmp.lt.s32.totalorder %s10, 3
    %p166 = pnand %p164, %p165
    %p167 = pneg %p166
    // Predicated region
    $region9: #{tpu_custom_call.1} parent=5 // pred_check
      _
    $region10: #{tpu_custom_call.1} parent=5 // pred_check_branch
      %169 = sbr.rel (%p166) target = $region12
    $region11: #{tpu_custom_call.1} parent=5 // pred_region
      %s170 = ssub.s32 %s10, 1
    $region12: #{tpu_custom_call.1} parent=5 // pred_fallthru
      _
    %p171 = scmp.lt.s32.totalorder %s10, 2
    // Predicated region
    $region13: #{tpu_custom_call.1} parent=5 // pred_check
      %p172 = pneg %p171
    $region14: #{tpu_custom_call.1} parent=5 // pred_check_branch
      %174 = sbr.rel (%p172) target = $region16
    $region15: #{tpu_custom_call.1} parent=5 // pred_region
      // Predicated region
      $region17: #{tpu_custom_call.1} parent=15 // pred_check
        %p175 = pneg %p42
      $region18: #{tpu_custom_call.1} parent=15 // pred_check_branch
        %177 = sbr.rel (%p175) target = $region20
      $region19: #{tpu_custom_call.1} parent=15 // pred_region
        %s178 = smul.u32 2, %s17
        %p179 = scmp.lt.s32.totalorder %s178, 3
        %s180 = scalar_select %p179, %s178, 3
        %s181 = smul.addr %s180, 8
        %s182 = scalar_lea.vmem %s0, %s181
        %s183 = smul.u32 2, %s17
      $region20: #{tpu_custom_call.1} parent=15 // pred_fallthru
        _
      // Predicated region
      $region21: #{tpu_custom_call.1} parent=15 // pred_check
        %p184 = pneg %p68
      $region22: #{tpu_custom_call.1} parent=15 // pred_check_branch
        %186 = sbr.rel (%p184) target = $region24
      $region23: #{tpu_custom_call.1} parent=15 // pred_region
        %s187 = smul.u32 2, %s17
        %p188 = scmp.lt.s32.totalorder %s187, 3
        %s189 = scalar_select %p188, %s187, 3
        %s190 = smul.addr %s189, 8
        %s191 = scalar_lea.vmem %s1, %s190
        %s192 = smul.u32 2, %s17
      $region24: #{tpu_custom_call.1} parent=15 // pred_fallthru
        _
      // Predicated region
      $region25: #{tpu_custom_call.1} parent=15 // pred_check
        %p193 = pneg %p96
      $region26: #{tpu_custom_call.1} parent=15 // pred_check_branch
        %195 = sbr.rel (%p193) target = $region28
      $region27: #{tpu_custom_call.1} parent=15 // pred_region
        %s196 = smul.u32 2, %s17
        %p197 = scmp.lt.s32.totalorder %s196, 3
        %s198 = scalar_select %p197, %s196, 3
        %p199 = scmp.lt.s32.totalorder %s18, 0
        %s200 = scalar_select %p199, %s18, 0
        %s201 = sadd.s32 %s200, %s198
        %s202 = smul.addr %s201, 8
        %s203 = scalar_lea.vmem %s2, %s202
        %s204 = smul.u32 2, %s17
      $region28: #{tpu_custom_call.1} parent=15 // pred_fallthru
        _
      // Predicated region
      $region29: #{tpu_custom_call.1} parent=15 // pred_check
        %p205 = pneg %p124
      $region30: #{tpu_custom_call.1} parent=15 // pred_check_branch
        %207 = sbr.rel (%p205) target = $region32
      $region31: #{tpu_custom_call.1} parent=15 // pred_region
        %s208 = smul.u32 2, %s17
        %p209 = scmp.lt.s32.totalorder %s208, 3
        %s210 = scalar_select %p209, %s208, 3
        %p211 = scmp.lt.s32.totalorder %s18, 0
        %s212 = scalar_select %p211, %s18, 0
        %s213 = sadd.s32 %s212, %s210
        %s214 = smul.addr %s213, 8
        %s215 = scalar_lea.vmem %s3, %s214
        %s216 = smul.u32 2, %s17
      $region32: #{tpu_custom_call.1} parent=15 // pred_fallthru
        _
    $region16: #{tpu_custom_call.1} parent=5 // pred_fallthru
      _
    %p217 = scmp.le.s32.totalorder 1, %s10
    %p218 = scmp.lt.s32.totalorder %s10, 3
    %p219 = pnand %p217, %p218
    %p220 = pneg %p219
    // Predicated region
    $region33: #{tpu_custom_call.1} parent=5 // pred_check
      _
    $region34: #{tpu_custom_call.1} parent=5 // pred_check_branch
      %222 = sbr.rel (%p219) target = $region36
    $region35: #{tpu_custom_call.1} parent=5 // pred_region
      %s223 = ssub.s32 %s10, 1
      %s224 = smul.u32 2, %s19
      %p225 = scmp.lt.s32.totalorder %s224, 3
      %s226 = scalar_select %p225, %s224, 3
      %s227 = smul.addr %s226, 8
      %s228 = scalar_lea.vmem %s0, %s227
      %p229 = pneg %p48
      %p230 = pneg %p45
      %s231 = smul.u32 2, %s19
      %p232 = scmp.lt.s32.totalorder %s231, 3
      %s233 = scalar_select %p232, %s231, 3
      %s234 = smul.addr %s233, 8
      %s235 = scalar_lea.vmem %s1, %s234
      %p236 = pneg %p74
      %p237 = pneg %p71
      %s238 = smul.u32 2, %s19
      %p239 = scmp.lt.s32.totalorder %s238, 3
      %s240 = scalar_select %p239, %s238, 3
      %p241 = scmp.lt.s32.totalorder %s20, 0
      %s242 = scalar_select %p241, %s20, 0
      %s243 = sadd.s32 %s242, %s240
      %s244 = smul.addr %s243, 8
      %s245 = scalar_lea.vmem %s2, %s244
      %p246 = pneg %p102
      %p247 = pneg %p99
      %s248 = smul.u32 2, %s19
      %p249 = scmp.lt.s32.totalorder %s248, 3
      %s250 = scalar_select %p249, %s248, 3
      %p251 = scmp.lt.s32.totalorder %s20, 0
      %s252 = scalar_select %p251, %s20, 0
      %s253 = sadd.s32 %s252, %s250
      %s254 = smul.addr %s253, 8
      %s255 = scalar_lea.vmem %s3, %s254
      %p256 = pneg %p130
      %p257 = pneg %p127
      %p258 = pneg %p156
      %p259 = pneg %p153
      %p260 = scmp.lt.s32.totalorder %s19, 1
      %s261 = scalar_select %p260, %s19, 1
      %s262 = scalar_lea.vmem %s4, %s261
      %s263 = smul.u32 2, %s19
      %p264 = scmp.lt.s32.totalorder %s263, 3
      %s265 = scalar_select %p264, %s263, 3
      %s266 = smul.addr %s265, 8
      %s267 = scalar_lea.vmem %s0, %s266
      %s268 = smul.u32 2, %s19
      %s269 = smul.u32 2, %s19
      %p270 = scmp.lt.s32.totalorder %s269, 3
      %s271 = scalar_select %p270, %s269, 3
      %s272 = smul.addr %s271, 8
      %s273 = scalar_lea.vmem %s1, %s272
      %s274 = smul.u32 2, %s19
      %s275 = smul.u32 2, %s19
      %p276 = scmp.lt.s32.totalorder %s275, 3
      %s277 = scalar_select %p276, %s275, 3
      %p278 = scmp.lt.s32.totalorder %s20, 0
      %s279 = scalar_select %p278, %s20, 0
      %s280 = sadd.s32 %s279, %s277
      %s281 = smul.addr %s280, 8
      %s282 = scalar_lea.vmem %s2, %s281
      %s283 = smul.u32 2, %s19
      %s284 = smul.u32 2, %s19
      %p285 = scmp.lt.s32.totalorder %s284, 3
      %s286 = scalar_select %p285, %s284, 3
      %p287 = scmp.lt.s32.totalorder %s20, 0
      %s288 = scalar_select %p287, %s20, 0
      %s289 = sadd.s32 %s288, %s286
      %s290 = smul.addr %s289, 8
      %s291 = scalar_lea.vmem %s3, %s290
      %s292 = smul.u32 2, %s19
      %p293 = scmp.lt.s32.totalorder %s19, 1
      %s294 = scalar_select %p293, %s19, 1
      %s295 = scalar_lea.vmem %s4, %s294
      %p296 = scmp.eq.s32.totalorder %s20, 0
      // Predicated region
      $region37: #{tpu_custom_call.1} parent=35 // pred_check
        %p297 = pneg %p296
      $region38: #{tpu_custom_call.1} parent=35 // pred_check_branch
        %299 = sbr.rel (%p297) target = $region40
      $region39: #{tpu_custom_call.1} parent=35 // pred_region
        %vm300 = vcmask 7168
        %301 = vst.msk [vmem:[#allocation2] sm:$0xff] %vm300, -1e+30
        %302 = vst.msk [vmem:[#allocation2 + $0x8] sm:$0xff] %vm300, -1e+30
        %303 = vst.msk [vmem:[#allocation4] sm:$0xff] %vm300, -1e+30
        %304 = vst.msk [vmem:[#allocation4 + $0x8] sm:$0xff] %vm300, -1e+30
        %305 = vst.msk [vmem:[#allocation3] sm:$0xff] %vm300, 0.0
        %306 = vst.msk [vmem:[#allocation3 + $0x8] sm:$0xff] %vm300, 0.0
        %307 = vst.msk [vmem:[#allocation5] sm:$0xff] %vm300, 0.0
        %308 = vst.msk [vmem:[#allocation5 + $0x8] sm:$0xff] %vm300, 0.0
        %309 = vst.msk [vmem:[#allocation6] sm:$0xff] %vm300, 0.0
        %310 = vst.msk [vmem:[#allocation6 + $0x8] sm:$0xff] %vm300, 0.0
      $region40: #{tpu_custom_call.1} parent=35 // pred_fallthru
        _
      %v311 = vld [vmem:[%s267] sm:$0xff]
      %v312 = vld [vmem:[%s267 + $0x8] sm:$0xff]
      %s313 = smul.u32 %s20, 128
      %v314 = vlaneseq
      %v315 = vand.u32 %v314, 127
      %v316 = vstv %s313
      %v317 = vadd.s32 %v316, %v315
      %318 = vset.pattern.permute.xlu0 0
      %319 = vperm.xlu0 %318, %v311
      %v320 = vpop.permute.xlu0 %319
      %321 = vset.pattern.permute.xlu0 0
      %322 = vperm.xlu0 %321, %v312
      %v323 = vpop.permute.xlu0 %322
      %vm324 = vcmp.eq.s32.totalorder %v317, %v320
      %vm325 = vcmp.eq.s32.totalorder %v317, %v323
      %v326 = vld [vmem:[%s282] sm:$0xff]
      %v327 = vld [vmem:[%s282 + $0x8] sm:$0xff]
      %328 = vmax.xlane.f32.xlu0 %v326
      %v329 = vpop.xlane.xlu0 %328
      %330 = vmax.xlane.f32.xlu0 %v327
      %v331 = vpop.xlane.xlu0 %330
      %v332 = vld [vmem:[#allocation2] sm:$0xff]
      %v333 = vld [vmem:[#allocation2 + $0x8] sm:$0xff]
      %v334 = vmax.f32 %v332, %v329
      %v335 = vmax.f32 %v333, %v331
      %v336 = vld [vmem:[#allocation3] sm:$0xff]
      %v337 = vld [vmem:[#allocation3 + $0x8] sm:$0xff]
      %v338 = vsub.f32 %v332, %v334
      %v339 = vsub.f32 %v333, %v335
      %v340 = vmul.f32 %v338, 1.442695
      %v341 = vpow.pop %v340
      %v342 = vmul.f32 %v339, 1.442695
      %v343 = vpow.pop %v342
      %v344 = vmul.f32 %v336, %v341
      %v345 = vmul.f32 %v337, %v343
      %347 = vset.pattern.permute.xlu0 0
      %348 = vperm.xlu0 %347, %v334
      %v349 = vpop.permute.xlu0 %348
      %352 = vset.pattern.permute.xlu0 0
      %353 = vperm.xlu0 %352, %v335
      %v354 = vpop.permute.xlu0 %353
      %v356 = vsub.f32 %v326, %v349
      %v357 = vsub.f32 %v327, %v354
      %v358 = vmul.f32 %v356, 1.442695
      %v359 = vpow.pop %v358
      %v360 = vmul.f32 %v357, 1.442695
      %v361 = vpow.pop %v360
      %362 = vadd.xlane.f32.xlu0 %v359
      %v363 = vpop.xlane.xlu0 %362
      %364 = vadd.xlane.f32.xlu0 %v361
      %v365 = vpop.xlane.xlu0 %364
      %v366 = vadd.f32 %v344, %v363
      %v367 = vadd.f32 %v345, %v365
      %vm368 = vcmask 7168
      %369 = vst.msk [vmem:[#allocation3] sm:$0xff] %vm368, %v366
      %370 = vst.msk [vmem:[#allocation3 + $0x8] sm:$0xff] %vm368, %v367
      %371 = vst.msk [vmem:[#allocation2] sm:$0xff] %vm368, %v334
      %372 = vst.msk [vmem:[#allocation2 + $0x8] sm:$0xff] %vm368, %v335
      %v373 = vsel %vm324, %v326, 0.0
      %v374 = vsel %vm325, %v327, 0.0
      %375 = vadd.xlane.f32.xlu0 %v373
      %v376 = vpop.xlane.xlu0 %375
      %377 = vadd.xlane.f32.xlu0 %v374
      %v378 = vpop.xlane.xlu0 %377
      %v379 = vld [vmem:[%s291] sm:$0xff]
      %v380 = vld [vmem:[%s291 + $0x8] sm:$0xff]
      %381 = vmax.xlane.f32.xlu0 %v379
      %v382 = vpop.xlane.xlu0 %381
      %383 = vmax.xlane.f32.xlu0 %v380
      %v384 = vpop.xlane.xlu0 %383
      %v385 = vld [vmem:[#allocation4] sm:$0xff]
      %v386 = vld [vmem:[#allocation4 + $0x8] sm:$0xff]
      %v387 = vmax.f32 %v385, %v382
      %v388 = vmax.f32 %v386, %v384
      %v389 = vld [vmem:[#allocation5] sm:$0xff]
      %v390 = vld [vmem:[#allocation5 + $0x8] sm:$0xff]
      %v391 = vsub.f32 %v385, %v387
      %v392 = vsub.f32 %v386, %v388
      %v393 = vmul.f32 %v391, 1.442695
      %v394 = vpow.pop %v393
      %v395 = vmul.f32 %v392, 1.442695
      %v396 = vpow.pop %v395
      %v397 = vmul.f32 %v389, %v394
      %v398 = vmul.f32 %v390, %v396
      %400 = vset.pattern.permute.xlu0 0
      %401 = vperm.xlu0 %400, %v387
      %v402 = vpop.permute.xlu0 %401
      %405 = vset.pattern.permute.xlu0 0
      %406 = vperm.xlu0 %405, %v388
      %v407 = vpop.permute.xlu0 %406
      %v409 = vsub.f32 %v379, %v402
      %v410 = vsub.f32 %v380, %v407
      %v411 = vmul.f32 %v409, 1.442695
      %v412 = vpow.pop %v411
      %v413 = vmul.f32 %v410, 1.442695
      %v414 = vpow.pop %v413
      %415 = vadd.xlane.f32.xlu0 %v412
      %v416 = vpop.xlane.xlu0 %415
      %417 = vadd.xlane.f32.xlu0 %v414
      %v418 = vpop.xlane.xlu0 %417
      %v419 = vadd.f32 %v397, %v416
      %v420 = vadd.f32 %v398, %v418
      %421 = vst.msk [vmem:[#allocation5] sm:$0xff] %vm368, %v419
      %422 = vst.msk [vmem:[#allocation5 + $0x8] sm:$0xff] %vm368, %v420
      %423 = vst.msk [vmem:[#allocation4] sm:$0xff] %vm368, %v387
      %424 = vst.msk [vmem:[#allocation4 + $0x8] sm:$0xff] %vm368, %v388
      %v425 = vsel %vm324, %v379, 0.0
      %v426 = vsel %vm325, %v380, 0.0
      %427 = vadd.xlane.f32.xlu0 %v425
      %v428 = vpop.xlane.xlu0 %427
      %429 = vadd.xlane.f32.xlu0 %v426
      %v430 = vpop.xlane.xlu0 %429
      %v431 = vld [vmem:[#allocation6] sm:$0xff]
      %v432 = vld [vmem:[#allocation6 + $0x8] sm:$0xff]
      %v433 = vsub.f32 %v376, %v428
      %v434 = vsub.f32 %v378, %v430
      %v435 = vadd.f32 %v431, %v433
      %v436 = vadd.f32 %v432, %v434
      %437 = vst.msk [vmem:[#allocation6] sm:$0xff] %vm368, %v435
      %438 = vst.msk [vmem:[#allocation6 + $0x8] sm:$0xff] %vm368, %v436
      // Predicated region
      $region41: #{tpu_custom_call.1} parent=35 // pred_check
        %p439 = pneg %p296
      $region42: #{tpu_custom_call.1} parent=35 // pred_check_branch
        %441 = sbr.rel (%p439) target = $region44
      $region43: #{tpu_custom_call.1} parent=35 // pred_region
        %v442 = vld [vmem:[#allocation2] sm:$0xff]
        %v443 = vld [vmem:[#allocation2 + $0x8] sm:$0xff]
        %v444 = vld [vmem:[#allocation3] sm:$0xff]
        %v445 = vld [vmem:[#allocation3 + $0x8] sm:$0xff]
        %v446 = vlog2.pop %v444
        %v447 = vmul.f32 %v446, 0.6931472
        %v448 = vlog2.pop %v445
        %v449 = vmul.f32 %v448, 0.6931472
        %v450 = vadd.f32 %v442, %v447
        %v451 = vadd.f32 %v443, %v449
        %v452 = vld [vmem:[#allocation4] sm:$0xff]
        %v453 = vld [vmem:[#allocation4 + $0x8] sm:$0xff]
        %v454 = vld [vmem:[#allocation5] sm:$0xff]
        %v455 = vld [vmem:[#allocation5 + $0x8] sm:$0xff]
        %v456 = vlog2.pop %v454
        %v457 = vmul.f32 %v456, 0.6931472
        %v458 = vlog2.pop %v455
        %v459 = vmul.f32 %v458, 0.6931472
        %v460 = vadd.f32 %v452, %v457
        %v461 = vadd.f32 %v453, %v459
        %v462 = vld [vmem:[#allocation6] sm:$0xff]
        %v463 = vld [vmem:[#allocation6 + $0x8] sm:$0xff]
        %v464 = vsub.f32 %v460, %v450
        %v465 = vsub.f32 %v461, %v451
        %v466 = vadd.f32 %v462, %v464
        %v467 = vadd.f32 %v463, %v465
        %v468 = vmul.f32 %v466, 1.442695
        %v469 = vpow.pop %v468
        %v470 = vmul.f32 %v467, 1.442695
        %v471 = vpow.pop %v470
        %v472 = vld [vmem:[%s273] sm:$0xff]
        %v473 = vld [vmem:[%s273 + $0x8] sm:$0xff]
        %v474 = vmul.f32 %v469, %v472
        %v475 = vmul.f32 %v471, %v473
        %v476 = vsel %vm368, %v474, 0.0
        %v477 = vsel %vm368, %v475, 0.0
        %v478 = vadd.f32 %v476, %v477
        %v479 = vrot.slane %v478, 4
        %v480 = vadd.f32 %v478, %v479
        %v481 = vrot.slane %v480, 2
        %v482 = vadd.f32 %v480, %v481
        %v483 = vrot.slane %v482, 1
        %v484 = vadd.f32 %v482, %v483
        %vm485 = vcmask 0
        %486 = vst.msk [vmem:[%s295] sm:$0x1] %vm485, %v484
      $region44: #{tpu_custom_call.1} parent=35 // pred_fallthru
        _
      %p487 = scmp.lt.s32.totalorder %s19, 1
      %s488 = scalar_select %p487, %s19, 1
      %s489 = scalar_lea.vmem %s4, %s488
      // Predicated region
      $region45: #{tpu_custom_call.1} parent=35 // pred_check
        %p490 = pneg %p153
      $region46: #{tpu_custom_call.1} parent=35 // pred_check_branch
        %492 = sbr.rel (%p490) target = $region48
      $region47: #{tpu_custom_call.1} parent=35 // pred_region
        _
      $region48: #{tpu_custom_call.1} parent=35 // pred_fallthru
        _
    $region36: #{tpu_custom_call.1} parent=5 // pred_fallthru
      _
    %p493 = scmp.le.s32.totalorder 2, %s10
    // Predicated region
    $region49: #{tpu_custom_call.1} parent=5 // pred_check
      %p494 = pneg %p493
    $region50: #{tpu_custom_call.1} parent=5 // pred_check_branch
      %496 = sbr.rel (%p494) target = $region52
    $region51: #{tpu_custom_call.1} parent=5 // pred_region
      %s497 = ssub.s32 %s10, 2
      // Predicated region
      $region53: #{tpu_custom_call.1} parent=51 // pred_check
        %p498 = pneg %p159
      $region54: #{tpu_custom_call.1} parent=51 // pred_check_branch
        %500 = sbr.rel (%p498) target = $region56
      $region55: #{tpu_custom_call.1} parent=51 // pred_region
        %p501 = scmp.lt.s32.totalorder %s21, 1
        %s502 = scalar_select %p501, %s21, 1
        %s503 = scalar_lea.vmem %s4, %s502
      $region56: #{tpu_custom_call.1} parent=51 // pred_fallthru
        _
    $region52: #{tpu_custom_call.1} parent=5 // pred_fallthru
      _
  $region6: #{tpu_custom_call.1} parent=0 // loop_footer
    %s14 = sadd.s32 1, %s10
  $region7: #{tpu_custom_call.1} parent=0 // loop_footer_branch
    %9 = sbr.rel target = $region3
  $region8: #{tpu_custom_call.1} parent=0 // loop_exit
    _

</llo_original>
